<compile_context>
chip_gen: v6e
topology: v6e:2x2x1
jax: 0.10.0
libtpu: 0.0.40
codegen_flags: <defaults>
</compile_context>

<pallas_src>
import functools
import math

import jax
import jax.numpy as jnp
from jax.experimental import pallas as pl
from jax.experimental.pallas import tpu as pltpu


def _round_up(x, m):
    return (x + m - 1) // m * m


def _mlm_head_kernel(x_ref, wd_ref, bd_ref, g_ref, b_ref, wdec_ref, bias_ref,
                     out_ref, t_ref, *, eps):
    # Grid = (token tiles, vocab tiles).  The transform is identical for every
    # vocab tile of the same token tile, so compute it once (vocab index == 0)
    # into the bf16 VMEM scratch t_ref; it persists across grid iterations.
    @pl.when(pl.program_id(1) == 0)
    def _():
        # bf16 x bf16 matmul, f32 accumulate on the MXU.
        h = jnp.dot(x_ref[...], wd_ref[...],
                    preferred_element_type=jnp.float32) + bd_ref[...]
        # exact (erf-based) gelu, matching HF BERT's `gelu`  (f32 math)
        h = 0.5 * h * (1.0 + jax.lax.erf(h * (1.0 / math.sqrt(2.0))))
        # LayerNorm over hidden dim (f32 math)
        mean = jnp.mean(h, axis=-1, keepdims=True)
        var = jnp.mean((h - mean) ** 2, axis=-1, keepdims=True)
        h = (h - mean) * jax.lax.rsqrt(var + eps)
        t_ref[...] = (h * g_ref[...] + b_ref[...]).astype(t_ref.dtype)

    # Decoder matmul for this (token tile, vocab tile) + tied bias.
    out_ref[...] = (jnp.dot(t_ref[...], wdec_ref[...],
                            preferred_element_type=jnp.float32)
                    + bias_ref[...]).astype(out_ref.dtype)


def _vmem_budget_bytes(tm, tv, H, out_itemsize):
    bf16 = 2
    f32 = 4
    total = (
        2 * tm * H * bf16              # x tiles (double-buffered)
        + 2 * H * H * bf16             # dense W (resident, 2 buffers reserved)
        + 2 * 3 * H * f32              # dense b, gamma, beta
        + 2 * H * tv * bf16            # decoder W tiles
        + 2 * tv * f32                 # decoder bias tiles
        + 2 * tm * tv * out_itemsize   # output tiles
        + tm * H * bf16                # transform scratch
    )
    est = int(total * 1.5) + (2 << 20)
    # Stay within v7x physical VMEM (64 MiB); never request less than 32 MiB.
    return min(max(est, 32 << 20), 64 << 20)


def bert_only_mlm_head(sequence_output, params, *, tm=512, tv=1024,
                       eps=1e-12, out_dtype=jnp.float32):
    """sequence_output: [B, S, H].  Returns prediction_scores: [B, S, V]."""
    B, S, H = sequence_output.shape
    M = B * S
    V = params["decoder_w"].shape[1]

    # Effective tile sizes (never larger than the padded problem).
    tm_eff = min(tm, _round_up(M, 8))
    tv_eff = min(tv, _round_up(V, 128))
    M_pad = _round_up(M, tm_eff)
    V_pad = _round_up(V, tv_eff)

    # bf16 matmul operands (f32 accumulation inside the kernel).
    x2d = sequence_output.reshape(M, H).astype(jnp.bfloat16)
    wd = params["dense_w"].astype(jnp.bfloat16)
    wdec = params["decoder_w"].astype(jnp.bfloat16)
    bd = params["dense_b"].reshape(1, H).astype(jnp.float32)
    gamma = params["ln_gamma"].reshape(1, H).astype(jnp.float32)
    beta = params["ln_beta"].reshape(1, H).astype(jnp.float32)
    bias = params["decoder_bias"].reshape(1, V).astype(jnp.float32)

    # Pad tokens / vocab to tile multiples (real BERT vocab is 30522).
    if M_pad != M:
        x2d = jnp.pad(x2d, ((0, M_pad - M), (0, 0)))
    if V_pad != V:
        wdec = jnp.pad(wdec, ((0, 0), (0, V_pad - V)))
        bias = jnp.pad(bias, ((0, 0), (0, V_pad - V)))

    kernel = functools.partial(_mlm_head_kernel, eps=eps)
    out_itemsize = jnp.dtype(out_dtype).itemsize

    out2d = pl.pallas_call(
        kernel,
        out_shape=jax.ShapeDtypeStruct((M_pad, V_pad), out_dtype),
        grid_spec=pltpu.PrefetchScalarGridSpec(
            num_scalar_prefetch=0,
            grid=(M_pad // tm_eff, V_pad // tv_eff),
            in_specs=[
                pl.BlockSpec((tm_eff, H), lambda i, j: (i, 0)),   # x tile
                pl.BlockSpec((H, H), lambda i, j: (0, 0)),        # dense W [in,out]
                pl.BlockSpec((1, H), lambda i, j: (0, 0)),        # dense b
                pl.BlockSpec((1, H), lambda i, j: (0, 0)),        # LN gamma
                pl.BlockSpec((1, H), lambda i, j: (0, 0)),        # LN beta
                pl.BlockSpec((H, tv_eff), lambda i, j: (0, j)),   # decoder W tile
                pl.BlockSpec((1, tv_eff), lambda i, j: (0, j)),   # decoder bias tile
            ],
            out_specs=pl.BlockSpec((tm_eff, tv_eff), lambda i, j: (i, j)),
            scratch_shapes=[pltpu.VMEM((tm_eff, H), jnp.bfloat16)],
        ),
        compiler_params=pltpu.CompilerParams(
            # Token axis is independent -> megacore-shardable; vocab axis must
            # stay "arbitrary" (transform scratch is written only at j == 0).
            dimension_semantics=("parallel", "arbitrary"),
            vmem_limit_bytes=_vmem_budget_bytes(tm_eff, tv_eff, H, out_itemsize),
        ),
    )(x2d, wd, bd, gamma, beta, wdec, bias)

    return out2d[:M, :V].reshape(B, S, V)


def init_params(key, hidden_size, vocab_size):
    """Deterministic synthetic parameters (weights stored as [in, out])."""
    k1, k2, k3, k4 = jax.random.split(key, 4)
    scale = 0.02
    return {
        "dense_w": scale * jax.random.normal(k1, (hidden_size, hidden_size),
                                             jnp.float32),
        "dense_b": scale * jax.random.normal(k2, (hidden_size,), jnp.float32),
        "ln_gamma": jnp.ones((hidden_size,), jnp.float32),
        "ln_beta": jnp.zeros((hidden_size,), jnp.float32),
        "decoder_w": scale * jax.random.normal(k3, (hidden_size, vocab_size),
                                               jnp.float32),
        "decoder_bias": scale * jax.random.normal(k4, (vocab_size,),
                                                  jnp.float32),
    }


def _reference(sequence_output, params, eps=1e-12):
    # Pure-JAX reference mirroring the kernel's bf16-operand / f32-accumulate
    # matmul numerics.
    B, S, H = sequence_output.shape
    x = sequence_output.reshape(-1, H).astype(jnp.bfloat16)
    h = jnp.dot(x, params["dense_w"].astype(jnp.bfloat16),
                preferred_element_type=jnp.float32) + params["dense_b"]
    h = 0.5 * h * (1.0 + jax.lax.erf(h / jnp.sqrt(2.0)))
    mean = jnp.mean(h, axis=-1, keepdims=True)
    var = jnp.mean((h - mean) ** 2, axis=-1, keepdims=True)
    h = (h - mean) * jax.lax.rsqrt(var + eps)
    t = (h * params["ln_gamma"] + params["ln_beta"]).astype(jnp.bfloat16)
    scores = jnp.dot(t, params["decoder_w"].astype(jnp.bfloat16),
                     preferred_element_type=jnp.float32) + params["decoder_bias"]
    return scores.reshape(B, S, -1)


if __name__ == "__main__":
    # Small BERT-like config; vocab deliberately NOT a multiple of 128 to
    # exercise the padding path.
    B, S, H, V = 2, 8, 32, 300

    key = jax.random.PRNGKey(0)
    kx, kp = jax.random.split(key)
    sequence_output = jax.random.normal(kx, (B, S, H), jnp.float32)
    params = init_params(kp, H, V)
    ref = _reference(sequence_output, params)

    # 1) Small explicit tiles -> exercises both grid axes + vocab padding.
    scores = bert_only_mlm_head(sequence_output, params, tm=8, tv=128)
    scores = jax.block_until_ready(scores)
    assert scores.shape == (B, S, V)
    err = float(jnp.max(jnp.abs(scores - ref)))
    assert jnp.allclose(scores, ref, atol=1e-2, rtol=1e-2), err

    # 2) Default (large) tiles -> exercises the tile-clamping path.
    scores2 = bert_only_mlm_head(sequence_output, params)
    scores2 = jax.block_until_ready(scores2)
    assert scores2.shape == (B, S, V)
    err2 = float(jnp.max(jnp.abs(scores2 - ref)))
    assert jnp.allclose(scores2, ref, atol=1e-2, rtol=1e-2), err2

    print("KERNEL_OK")
</pallas_src>

<mosaic_0001>
module attributes {stable_mosaic.version = 11 : i64} {
  func.func @_mlm_head_kernel(%arg0: i32, %arg1: i32, %arg2: memref<8x32xbf16, #tpu.memory_space<vmem>>, %arg3: memref<32x32xbf16, #tpu.memory_space<vmem>>, %arg4: memref<1x32xf32, #tpu.memory_space<vmem>>, %arg5: memref<1x32xf32, #tpu.memory_space<vmem>>, %arg6: memref<1x32xf32, #tpu.memory_space<vmem>>, %arg7: memref<32x128xbf16, #tpu.memory_space<vmem>>, %arg8: memref<1x128xf32, #tpu.memory_space<vmem>>, %arg9: memref<8x128xf32, #tpu.memory_space<vmem>>, %arg10: memref<8x32xbf16, #tpu.memory_space<vmem>>) attributes {dimension_semantics = [#tpu.dimension_semantics<parallel>, #tpu.dimension_semantics<arbitrary>], iteration_bounds = array<i64: 2, 3>, scalar_prefetch = 0 : i64, scratch_operands = 1 : i64, tpu.core_type = #tpu.core_type<tc>, window_params = [{transform_indices = @transform_0, window_bounds = array<i64: 8, 32>}, {pipeline_mode = #tpu.pipeline_mode<synchronous>, transform_indices = @transform_1, window_bounds = array<i64: 32, 32>}, {pipeline_mode = #tpu.pipeline_mode<synchronous>, transform_indices = @transform_2, window_bounds = array<i64: 1, 32>}, {pipeline_mode = #tpu.pipeline_mode<synchronous>, transform_indices = @transform_3, window_bounds = array<i64: 1, 32>}, {pipeline_mode = #tpu.pipeline_mode<synchronous>, transform_indices = @transform_4, window_bounds = array<i64: 1, 32>}, {transform_indices = @transform_5, window_bounds = array<i64: 32, 128>}, {transform_indices = @transform_6, window_bounds = array<i64: 1, 128>}, {transform_indices = @transform_7, window_bounds = array<i64: 8, 128>}]} {
    %c0_i32 = arith.constant 0 : i32
    %0 = arith.cmpi eq, %arg1, %c0_i32 : i32
    %1 = arith.extui %0 : i1 to i32
    %c0_i32_0 = arith.constant 0 : i32
    %2 = arith.cmpi ne, %1, %c0_i32_0 : i32
    scf.if %2 {
      %c0_8 = arith.constant 0 : index
      %c0_9 = arith.constant 0 : index
      %10 = vector.load %arg2[%c0_8, %c0_9] : memref<8x32xbf16, #tpu.memory_space<vmem>>, vector<8x32xbf16>
      %c0_10 = arith.constant 0 : index
      %c0_11 = arith.constant 0 : index
      %11 = vector.load %arg3[%c0_10, %c0_11] : memref<32x32xbf16, #tpu.memory_space<vmem>>, vector<32x32xbf16>
      %cst_12 = arith.constant dense<0.000000e+00> : vector<8x32xf32>
      %12 = tpu.matmul %10, %11, %cst_12 {dimension_numbers = #tpu.dot_dimension_numbers<[1], [0], [0], [1], [0, 0, 1, 1], [], []>} : vector<8x32xbf16>, vector<32x32xbf16>, vector<8x32xf32> -> vector<8x32xf32>
      %c0_13 = arith.constant 0 : index
      %c0_14 = arith.constant 0 : index
      %13 = vector.load %arg4[%c0_13, %c0_14] : memref<1x32xf32, #tpu.memory_space<vmem>>, vector<1x32xf32>
      %14 = vector.broadcast %13 : vector<1x32xf32> to vector<8x32xf32>
      %15 = arith.addf %12, %14 : vector<8x32xf32>
      %cst_15 = arith.constant 5.000000e-01 : f32
      %16 = vector.broadcast %cst_15 : f32 to vector<8x32xf32>
      %17 = arith.mulf %16, %15 : vector<8x32xf32>
      %cst_16 = arith.constant 0.707106769 : f32
      %18 = vector.broadcast %cst_16 : f32 to vector<8x32xf32>
      %19 = arith.mulf %15, %18 : vector<8x32xf32>
      %20 = math.erf %19 : vector<8x32xf32>
      %cst_17 = arith.constant 1.000000e+00 : f32
      %21 = vector.broadcast %cst_17 : f32 to vector<8x32xf32>
      %22 = arith.addf %21, %20 : vector<8x32xf32>
      %23 = arith.mulf %17, %22 : vector<8x32xf32>
      %cst_18 = arith.constant dense<0.000000e+00> : vector<8xf32>
      %24 = vector.multi_reduction <add>, %23, %cst_18 [1] : vector<8x32xf32> to vector<8xf32>
      %25 = vector.shape_cast %24 : vector<8xf32> to vector<8x1xf32>
      %cst_19 = arith.constant 3.200000e+01 : f32
      %26 = vector.broadcast %cst_19 : f32 to vector<8x1xf32>
      %27 = arith.divf %25, %26 : vector<8x1xf32>
      %28 = vector.broadcast %27 : vector<8x1xf32> to vector<8x32xf32>
      %29 = arith.subf %23, %28 : vector<8x32xf32>
      %30 = arith.mulf %29, %29 : vector<8x32xf32>
      %cst_20 = arith.constant dense<0.000000e+00> : vector<8xf32>
      %31 = vector.multi_reduction <add>, %30, %cst_20 [1] : vector<8x32xf32> to vector<8xf32>
      %32 = vector.shape_cast %31 : vector<8xf32> to vector<8x1xf32>
      %cst_21 = arith.constant 3.200000e+01 : f32
      %33 = vector.broadcast %cst_21 : f32 to vector<8x1xf32>
      %34 = arith.divf %32, %33 : vector<8x1xf32>
      %35 = vector.broadcast %27 : vector<8x1xf32> to vector<8x32xf32>
      %36 = arith.subf %23, %35 : vector<8x32xf32>
      %cst_22 = arith.constant 9.99999996E-13 : f32
      %37 = vector.broadcast %cst_22 : f32 to vector<8x1xf32>
      %38 = arith.addf %34, %37 : vector<8x1xf32>
      %39 = math.rsqrt %38 : vector<8x1xf32>
      %40 = vector.broadcast %39 : vector<8x1xf32> to vector<8x32xf32>
      %41 = arith.mulf %36, %40 : vector<8x32xf32>
      %c0_23 = arith.constant 0 : index
      %c0_24 = arith.constant 0 : index
      %42 = vector.load %arg5[%c0_23, %c0_24] : memref<1x32xf32, #tpu.memory_space<vmem>>, vector<1x32xf32>
      %43 = vector.broadcast %42 : vector<1x32xf32> to vector<8x32xf32>
      %44 = arith.mulf %41, %43 : vector<8x32xf32>
      %c0_25 = arith.constant 0 : index
      %c0_26 = arith.constant 0 : index
      %45 = vector.load %arg6[%c0_25, %c0_26] : memref<1x32xf32, #tpu.memory_space<vmem>>, vector<1x32xf32>
      %46 = vector.broadcast %45 : vector<1x32xf32> to vector<8x32xf32>
      %47 = arith.addf %44, %46 : vector<8x32xf32>
      %48 = arith.truncf %47 : vector<8x32xf32> to vector<8x32xbf16>
      %c0_27 = arith.constant 0 : index
      %c0_28 = arith.constant 0 : index
      %49 = vector.load %arg10[%c0_27, %c0_28] : memref<8x32xbf16, #tpu.memory_space<vmem>>, vector<8x32xbf16>
      tpu.vector_store %arg10[%c0_27, %c0_28], %48 {strides = array<i32>} : memref<8x32xbf16, #tpu.memory_space<vmem>>, vector<8x32xbf16>,
    } else {
    }
    %c0 = arith.constant 0 : index
    %c0_1 = arith.constant 0 : index
    %3 = vector.load %arg10[%c0, %c0_1] : memref<8x32xbf16, #tpu.memory_space<vmem>>, vector<8x32xbf16>
    %c0_2 = arith.constant 0 : index
    %c0_3 = arith.constant 0 : index
    %4 = vector.load %arg7[%c0_2, %c0_3] : memref<32x128xbf16, #tpu.memory_space<vmem>>, vector<32x128xbf16>
    %cst = arith.constant dense<0.000000e+00> : vector<8x128xf32>
    %5 = tpu.matmul %3, %4, %cst {dimension_numbers = #tpu.dot_dimension_numbers<[1], [0], [0], [1], [0, 0, 1, 1], [], []>} : vector<8x32xbf16>, vector<32x128xbf16>, vector<8x128xf32> -> vector<8x128xf32>
    %c0_4 = arith.constant 0 : index
    %c0_5 = arith.constant 0 : index
    %6 = vector.load %arg8[%c0_4, %c0_5] : memref<1x128xf32, #tpu.memory_space<vmem>>, vector<1x128xf32>
    %7 = vector.broadcast %6 : vector<1x128xf32> to vector<8x128xf32>
    %8 = arith.addf %5, %7 : vector<8x128xf32>
    %c0_6 = arith.constant 0 : index
    %c0_7 = arith.constant 0 : index
    %9 = vector.load %arg9[%c0_6, %c0_7] : memref<8x128xf32, #tpu.memory_space<vmem>>, vector<8x128xf32>
    tpu.vector_store %arg9[%c0_6, %c0_7], %8 {strides = array<i32>} : memref<8x128xf32, #tpu.memory_space<vmem>>, vector<8x128xf32>,
    return
  }
  func.func @transform_0(%arg0: i32, %arg1: i32) -> (i32, i32) {
    %c0_i32 = arith.constant 0 : i32
    %c0_i32_0 = arith.constant 0 : i32
    return %arg0, %c0_i32 : i32, i32
  }
  func.func @transform_1(%arg0: i32, %arg1: i32) -> (i32, i32) {
    %c0_i32 = arith.constant 0 : i32
    %c0_i32_0 = arith.constant 0 : i32
    %c0_i32_1 = arith.constant 0 : i32
    return %c0_i32, %c0_i32_0 : i32, i32
  }
  func.func @transform_2(%arg0: i32, %arg1: i32) -> (i32, i32) {
    %c0_i32 = arith.constant 0 : i32
    %c0_i32_0 = arith.constant 0 : i32
    %c0_i32_1 = arith.constant 0 : i32
    return %c0_i32, %c0_i32_0 : i32, i32
  }
  func.func @transform_3(%arg0: i32, %arg1: i32) -> (i32, i32) {
    %c0_i32 = arith.constant 0 : i32
    %c0_i32_0 = arith.constant 0 : i32
    %c0_i32_1 = arith.constant 0 : i32
    return %c0_i32, %c0_i32_0 : i32, i32
  }
  func.func @transform_4(%arg0: i32, %arg1: i32) -> (i32, i32) {
    %c0_i32 = arith.constant 0 : i32
    %c0_i32_0 = arith.constant 0 : i32
    %c0_i32_1 = arith.constant 0 : i32
    return %c0_i32, %c0_i32_0 : i32, i32
  }
  func.func @transform_5(%arg0: i32, %arg1: i32) -> (i32, i32) {
    %c0_i32 = arith.constant 0 : i32
    %c0_i32_0 = arith.constant 0 : i32
    return %c0_i32, %arg1 : i32, i32
  }
  func.func @transform_6(%arg0: i32, %arg1: i32) -> (i32, i32) {
    %c0_i32 = arith.constant 0 : i32
    %c0_i32_0 = arith.constant 0 : i32
    return %c0_i32, %arg1 : i32, i32
  }
  func.func @transform_7(%arg0: i32, %arg1: i32) -> (i32, i32) {
    %c0_i32 = arith.constant 0 : i32
    return %arg0, %arg1 : i32, i32
  }
}

</mosaic_0001>

<llo_original>
// kernel: tpu_custom_call.1
$region0: #{tpu_custom_call.1}
  #allocation0 [shape = 'u32[]', space=smem, size = 0x4, offset = 0x4, fixed_abs, tag = 'smem constant byte address 0x4 - core index']
  #allocation1 [shape = 'u32[144,128]{1,0:T(1,128)}', space=vmem, size = 0x12000, scoped, tag = 'internal scratch']
  #allocation2 [shape = 'bf16[8,32]{1,0:T(8,128)(2,1)}', space=vmem, size = 0x800, scoped, tag = 'scratch operand']
  %s0 = inlined_call_operand.hbm [shape: bf16[16,32], index: 0, kind: input, shape index: {}]
  %s1 = inlined_call_operand.hbm [shape: bf16[32,32], index: 1, kind: input, shape index: {}]
  %s2 = inlined_call_operand.vmem [shape: f32[1,32], index: 2, kind: input, shape index: {}]
  %s3 = inlined_call_operand.vmem [shape: f32[1,32], index: 3, kind: input, shape index: {}]
  %s4 = inlined_call_operand.vmem [shape: f32[1,32], index: 4, kind: input, shape index: {}]
  %s5 = inlined_call_operand.hbm [shape: bf16[32,384], index: 5, kind: input, shape index: {}]
  %s6 = inlined_call_operand.vmem [shape: f32[1,384], index: 6, kind: input, shape index: {}]
  %s7 = inlined_call_operand.hbm [shape: f32[16,384], index: 7, kind: output, shape index: {}]
  %s8 = sld [smem:[#allocation0]]
  $region77: #{tpu_custom_call.1} parent=0
    _
  %s10 = ssub.s32 1, %s8
  %s11 = scalar_select 0, %s10, %s8
  $region1: #{tpu_custom_call.1} parent=0
    #allocation3 [shape = 'u8[4096]{0}', space=vmem, size = 0x1000, scoped, tag = 'input window, operand 0']
    #allocation4 [shape = 's32[2]{0}', space=sflag, size = 0x8, scoped, tag = 'scoped memory for tpu_custom_call.1']
    #allocation5 [shape = 's32[2]{0}', space=sflag, size = 0x8, scoped, tag = 'scoped memory for tpu_custom_call.1']
    #allocation6 [shape = 'u8[8192]{0}', space=vmem, size = 0x2000, scoped, tag = 'input window, operand 1, single buffered']
    #allocation7 [shape = 's32[1]{0}', space=sflag, size = 0x4, scoped, tag = 'scoped memory for tpu_custom_call.1']
    #allocation8 [shape = 'u8[16384]{0}', space=vmem, size = 0x4000, scoped, tag = 'input window, operand 5']
    #allocation9 [shape = 'u8[8192]{0}', space=vmem, size = 0x2000, scoped, tag = 'output window, operand 0']
    %12 = vsyncpa [#allocation4], 0
    %s13 = scalar_lea.sflag [#allocation4], 1
    %14 = vsyncpa %s13, 0
    %15 = vsyncpa [#allocation7], 0
    %16 = vsyncpa [#allocation5], 0
    %s17 = scalar_lea.sflag [#allocation5], 1
    %18 = vsyncpa %s17, 0
    loop: start=0, step=1, limit=8
    $region2: #{tpu_custom_call.1} parent=1 // loop_pre_header
      _
    $region3: #{tpu_custom_call.1} parent=1 // loop_header
      %s20 = sphi 0, %s24
      %p21 = scmp.ge.s32.totalorder %s20, 8
      %s27 = sphi 0, %s39
      %s28 = sphi 0, %s35
      %s29 = sphi 0, %s27
      %s30 = sphi 0, %s28
      %s31 = sphi 0, %s29
      %s32 = sphi 0, %s30
      %s42 = sphi 0, %s44
      %s45 = sphi 0, %s42
      %s46 = sphi 0, %s45
      %s62 = sphi 0, %s46
      %s66 = sphi 0, %s66
      %s68 = sphi 0, %s66
      %s69 = sphi 0, %s68
      %s83 = sphi 0, %s69
      %s87 = sphi 0, %s87
      %s89 = sphi 0, %s87
      %s90 = sphi 0, %s89
      %s104 = sphi 0, %s90
      %s108 = sphi 0, %s108
      %s110 = sphi 0, %s108
      %s111 = sphi 0, %s110
      %s125 = sphi 0, %s111
      %s129 = sphi 0, %s129
      %s131 = sphi 0, %s129
      %s132 = sphi 0, %s131
      %s146 = sphi 0, %s132
      %s152 = sphi 0, %s154
      %s155 = sphi 0, %s152
      %s156 = sphi 0, %s155
      %s172 = sphi 0, %s156
      %s178 = sphi 0, %s180
      %s181 = sphi 0, %s178
      %s182 = sphi 0, %s181
      %s198 = sphi 0, %s182
      %s206 = sphi 0, %s208
      %s209 = sphi 0, %s206
      %s210 = sphi 0, %s209
      %s226 = sphi 0, %s210
    $region4: #{tpu_custom_call.1} parent=1 // loop_header_branch
      %23 = sbr.rel (%p21) target = $region8
    $region5: #{tpu_custom_call.1} parent=1 // loop_body
      %s25 = ssub.s32 %s20, 1
      %s26 = ssub.s32 %s20, 2
      %s33 = sadd.s32 1, %s28
      %p34 = scmp.ge.s32.totalorder %s33, 3
      %s35 = scalar_select %p34, 0, %s33
      %s36 = sadd.s32 1, %s27
      %s37 = scalar_select %p34, %s36, %s27
      %p38 = scmp.ge.s32.totalorder %s37, 2
      %s39 = scalar_select %p38, 0, %s37
      %s40 = ssub.s32 %s27, %s39
      %p41 = scmp.eq.s32.totalorder %s40, 0
      %s43 = sadd.s32 %s42, 1
      %s44 = scalar_select %p41, %s42, %s43
      %p47 = pneg %p41
      %p48 = scmp.eq.s32.totalorder %s20, 5
      %p49 = por %p47, %p48
      %p50 = scmp.ne.s32.totalorder %s42, %s45
      %p51 = scmp.eq.s32.totalorder %s20, 0
      %p52 = por %p50, %p51
      %p53 = scmp.ne.s32.totalorder %s42, %s45
      %p54 = scmp.eq.s32.totalorder %s25, 5
      %p55 = por %p53, %p54
      %p56 = scmp.ne.s32.totalorder %s45, %s46
      %p57 = scmp.eq.s32.totalorder %s25, 0
      %p58 = por %p56, %p57
      %p59 = scmp.ne.s32.totalorder %s45, %s46
      %p60 = scmp.eq.s32.totalorder %s26, 5
      %p61 = por %p59, %p60
      %p63 = scmp.ne.s32.totalorder %s46, %s62
      %p64 = scmp.eq.s32.totalorder %s26, 0
      %p65 = por %p63, %p64
      %s67 = sadd.s32 %s66, 1
      %p70 = scmp.eq.s32.totalorder %s20, 5
      %p71 = scmp.ne.s32.totalorder %s66, %s68
      %p72 = scmp.eq.s32.totalorder %s20, 0
      %p73 = por %p71, %p72
      %p74 = scmp.ne.s32.totalorder %s66, %s68
      %p75 = scmp.eq.s32.totalorder %s25, 5
      %p76 = por %p74, %p75
      %p77 = scmp.ne.s32.totalorder %s68, %s69
      %p78 = scmp.eq.s32.totalorder %s25, 0
      %p79 = por %p77, %p78
      %p80 = scmp.ne.s32.totalorder %s68, %s69
      %p81 = scmp.eq.s32.totalorder %s26, 5
      %p82 = por %p80, %p81
      %p84 = scmp.ne.s32.totalorder %s69, %s83
      %p85 = scmp.eq.s32.totalorder %s26, 0
      %p86 = por %p84, %p85
      %s88 = sadd.s32 %s87, 1
      %p91 = scmp.eq.s32.totalorder %s20, 5
      %p92 = scmp.ne.s32.totalorder %s87, %s89
      %p93 = scmp.eq.s32.totalorder %s20, 0
      %p94 = por %p92, %p93
      %p95 = scmp.ne.s32.totalorder %s87, %s89
      %p96 = scmp.eq.s32.totalorder %s25, 5
      %p97 = por %p95, %p96
      %p98 = scmp.ne.s32.totalorder %s89, %s90
      %p99 = scmp.eq.s32.totalorder %s25, 0
      %p100 = por %p98, %p99
      %p101 = scmp.ne.s32.totalorder %s89, %s90
      %p102 = scmp.eq.s32.totalorder %s26, 5
      %p103 = por %p101, %p102
      %p105 = scmp.ne.s32.totalorder %s90, %s104
      %p106 = scmp.eq.s32.totalorder %s26, 0
      %p107 = por %p105, %p106
      %s109 = sadd.s32 %s108, 1
      %p112 = scmp.eq.s32.totalorder %s20, 5
      %p113 = scmp.ne.s32.totalorder %s108, %s110
      %p114 = scmp.eq.s32.totalorder %s20, 0
      %p115 = por %p113, %p114
      %p116 = scmp.ne.s32.totalorder %s108, %s110
      %p117 = scmp.eq.s32.totalorder %s25, 5
      %p118 = por %p116, %p117
      %p119 = scmp.ne.s32.totalorder %s110, %s111
      %p120 = scmp.eq.s32.totalorder %s25, 0
      %p121 = por %p119, %p120
      %p122 = scmp.ne.s32.totalorder %s110, %s111
      %p123 = scmp.eq.s32.totalorder %s26, 5
      %p124 = por %p122, %p123
      %p126 = scmp.ne.s32.totalorder %s111, %s125
      %p127 = scmp.eq.s32.totalorder %s26, 0
      %p128 = por %p126, %p127
      %s130 = sadd.s32 %s129, 1
      %p133 = scmp.eq.s32.totalorder %s20, 5
      %p134 = scmp.ne.s32.totalorder %s129, %s131
      %p135 = scmp.eq.s32.totalorder %s20, 0
      %p136 = por %p134, %p135
      %p137 = scmp.ne.s32.totalorder %s129, %s131
      %p138 = scmp.eq.s32.totalorder %s25, 5
      %p139 = por %p137, %p138
      %p140 = scmp.ne.s32.totalorder %s131, %s132
      %p141 = scmp.eq.s32.totalorder %s25, 0
      %p142 = por %p140, %p141
      %p143 = scmp.ne.s32.totalorder %s131, %s132
      %p144 = scmp.eq.s32.totalorder %s26, 5
      %p145 = por %p143, %p144
      %p147 = scmp.ne.s32.totalorder %s132, %s146
      %p148 = scmp.eq.s32.totalorder %s26, 0
      %p149 = por %p147, %p148
      %s150 = ssub.s32 %s28, %s35
      %p151 = scmp.eq.s32.totalorder %s150, 0
      %s153 = sadd.s32 %s152, 1
      %s154 = scalar_select %p151, %s152, %s153
      %p157 = pneg %p151
      %p158 = scmp.eq.s32.totalorder %s20, 5
      %p159 = por %p157, %p158
      %p160 = scmp.ne.s32.totalorder %s152, %s155
      %p161 = scmp.eq.s32.totalorder %s20, 0
      %p162 = por %p160, %p161
      %p163 = scmp.ne.s32.totalorder %s152, %s155
      %p164 = scmp.eq.s32.totalorder %s25, 5
      %p165 = por %p163, %p164
      %p166 = scmp.ne.s32.totalorder %s155, %s156
      %p167 = scmp.eq.s32.totalorder %s25, 0
      %p168 = por %p166, %p167
      %p169 = scmp.ne.s32.totalorder %s155, %s156
      %p170 = scmp.eq.s32.totalorder %s26, 5
      %p171 = por %p169, %p170
      %p173 = scmp.ne.s32.totalorder %s156, %s172
      %p174 = scmp.eq.s32.totalorder %s26, 0
      %p175 = por %p173, %p174
      %s176 = ssub.s32 %s28, %s35
      %p177 = scmp.eq.s32.totalorder %s176, 0
      %s179 = sadd.s32 %s178, 1
      %s180 = scalar_select %p177, %s178, %s179
      %p183 = pneg %p177
      %p184 = scmp.eq.s32.totalorder %s20, 5
      %p185 = por %p183, %p184
      %p186 = scmp.ne.s32.totalorder %s178, %s181
      %p187 = scmp.eq.s32.totalorder %s20, 0
      %p188 = por %p186, %p187
      %p189 = scmp.ne.s32.totalorder %s178, %s181
      %p190 = scmp.eq.s32.totalorder %s25, 5
      %p191 = por %p189, %p190
      %p192 = scmp.ne.s32.totalorder %s181, %s182
      %p193 = scmp.eq.s32.totalorder %s25, 0
      %p194 = por %p192, %p193
      %p195 = scmp.ne.s32.totalorder %s181, %s182
      %p196 = scmp.eq.s32.totalorder %s26, 5
      %p197 = por %p195, %p196
      %p199 = scmp.ne.s32.totalorder %s182, %s198
      %p200 = scmp.eq.s32.totalorder %s26, 0
      %p201 = por %p199, %p200
      %s202 = ssub.s32 %s27, %s39
      %s203 = ssub.s32 %s28, %s35
      %s204 = sor.u32 %s202, %s203
      %p205 = scmp.eq.s32.totalorder %s204, 0
      %s207 = sadd.s32 %s206, 1
      %s208 = scalar_select %p205, %s206, %s207
      %p211 = pneg %p205
      %p212 = scmp.eq.s32.totalorder %s20, 5
      %p213 = por %p211, %p212
      %p214 = scmp.ne.s32.totalorder %s206, %s209
      %p215 = scmp.eq.s32.totalorder %s20, 0
      %p216 = por %p214, %p215
      %p217 = scmp.ne.s32.totalorder %s206, %s209
      %p218 = scmp.eq.s32.totalorder %s25, 5
      %p219 = por %p217, %p218
      %p220 = scmp.ne.s32.totalorder %s209, %s210
      %p221 = scmp.eq.s32.totalorder %s25, 0
      %p222 = por %p220, %p221
      %p223 = scmp.ne.s32.totalorder %s209, %s210
      %p224 = scmp.eq.s32.totalorder %s26, 5
      %p225 = por %p223, %p224
      %p227 = scmp.ne.s32.totalorder %s210, %s226
      %p228 = scmp.eq.s32.totalorder %s26, 0
      %p229 = por %p227, %p228
      %p230 = scmp.le.s32.totalorder 1, %s20
      %p231 = scmp.lt.s32.totalorder %s20, 7
      %p232 = pnand %p230, %p231
      %p233 = pneg %p232
      // Predicated region
      $region9: #{tpu_custom_call.1} parent=5 // pred_check
        _
      $region10: #{tpu_custom_call.1} parent=5 // pred_check_branch
        %235 = sbr.rel (%p232) target = $region12
      $region11: #{tpu_custom_call.1} parent=5 // pred_region
        %s236 = ssub.s32 %s20, 1
        // Predicated region
        $region13: #{tpu_custom_call.1} parent=11 // pred_check
          %p237 = pneg %p79
        $region14: #{tpu_custom_call.1} parent=11 // pred_check_branch
          %239 = sbr.rel (%p237) target = $region16
        $region15: #{tpu_custom_call.1} parent=11 // pred_region
          %s241 = ssub.s32 256, 256
          %242 = vsyncadd [#allocation7], %s241
          %s243 = sshll.u32 [#allocation6], 4
          %s244 = int_to_ptr.vmem [resolvable:$true] %s243
          %249 = dma.hbm_to_vmem [thread:$0]  %s1, 256, %s244, [#allocation7], 64, 64, 4
        $region16: #{tpu_custom_call.1} parent=11 // pred_fallthru
          _
        // Predicated region
        $region17: #{tpu_custom_call.1} parent=11 // pred_check
          %p250 = pneg %p100
        $region18: #{tpu_custom_call.1} parent=11 // pred_check_branch
          %252 = sbr.rel (%p250) target = $region20
        $region19: #{tpu_custom_call.1} parent=11 // pred_region
          _
        $region20: #{tpu_custom_call.1} parent=11 // pred_fallthru
          _
        // Predicated region
        $region21: #{tpu_custom_call.1} parent=11 // pred_check
          %p253 = pneg %p121
        $region22: #{tpu_custom_call.1} parent=11 // pred_check_branch
          %255 = sbr.rel (%p253) target = $region24
        $region23: #{tpu_custom_call.1} parent=11 // pred_region
          _
        $region24: #{tpu_custom_call.1} parent=11 // pred_fallthru
          _
        // Predicated region
        $region25: #{tpu_custom_call.1} parent=11 // pred_check
          %p256 = pneg %p142
        $region26: #{tpu_custom_call.1} parent=11 // pred_check_branch
          %258 = sbr.rel (%p256) target = $region28
        $region27: #{tpu_custom_call.1} parent=11 // pred_region
          _
        $region28: #{tpu_custom_call.1} parent=11 // pred_fallthru
          _
      $region12: #{tpu_custom_call.1} parent=5 // pred_fallthru
        _
      %p259 = scmp.lt.s32.totalorder %s20, 6
      // Predicated region
      $region29: #{tpu_custom_call.1} parent=5 // pred_check
        %p260 = pneg %p259
      $region30: #{tpu_custom_call.1} parent=5 // pred_check_branch
        %262 = sbr.rel (%p260) target = $region32
      $region31: #{tpu_custom_call.1} parent=5 // pred_region
        // Predicated region
        $region33: #{tpu_custom_call.1} parent=31 // pred_check
          %p263 = pneg %p52
        $region34: #{tpu_custom_call.1} parent=31 // pred_check_branch
          %265 = sbr.rel (%p263) target = $region36
        $region35: #{tpu_custom_call.1} parent=31 // pred_region
          %s266 = sand.u32 %s20, 1
          %s267 = scalar_lea.sflag [#allocation4], %s266
          %s268 = sand.u32 %s42, 1
          %s269 = smul.addr %s268, 4
          %s270 = scalar_lea.vmem [#allocation3], %s269
          %s272 = ssub.s32 64, 64
          %273 = vsyncadd %s267, %s272
          %s274 = smul.addr %s27, 64
          %s275 = scalar_lea.hbm %s0, %s274
          %s277 = sshll.u32 %s270, 4
          %s278 = int_to_ptr.vmem [resolvable:$true] %s277
          %280 = dma.hbm_to_vmem [thread:$0]  %s275, 64, %s278, %s267
        $region36: #{tpu_custom_call.1} parent=31 // pred_fallthru
          _
        // Predicated region
        $region37: #{tpu_custom_call.1} parent=31 // pred_check
          %p281 = pneg %p162
        $region38: #{tpu_custom_call.1} parent=31 // pred_check_branch
          %283 = sbr.rel (%p281) target = $region40
        $region39: #{tpu_custom_call.1} parent=31 // pred_region
          %s284 = sand.u32 %s20, 1
          %s285 = scalar_lea.sflag [#allocation4], %s284
          %s286 = sand.u32 %s152, 1
          %s287 = smul.addr %s286, 16
          %s288 = scalar_lea.vmem [#allocation8], %s287
          %s290 = ssub.s32 256, 256
          %291 = vsyncadd %s285, %s290
          %s292 = smul.addr %s28, 64
          %s293 = scalar_lea.hbm %s5, %s292
          %s294 = sshll.u32 %s288, 4
          %s295 = int_to_ptr.vmem [resolvable:$true] %s294
          %300 = dma.hbm_to_vmem [thread:$0]  %s293, 256, %s295, %s285, 192, 64, 4
        $region40: #{tpu_custom_call.1} parent=31 // pred_fallthru
          _
        // Predicated region
        $region41: #{tpu_custom_call.1} parent=31 // pred_check
          %p301 = pneg %p188
        $region42: #{tpu_custom_call.1} parent=31 // pred_check_branch
          %303 = sbr.rel (%p301) target = $region44
        $region43: #{tpu_custom_call.1} parent=31 // pred_region
          %p304 = scmp.lt.s32.totalorder %s28, 2
          %s305 = scalar_select %p304, %s28, 2
          %s306 = scalar_lea.vmem %s6, %s305
        $region44: #{tpu_custom_call.1} parent=31 // pred_fallthru
          _
      $region32: #{tpu_custom_call.1} parent=5 // pred_fallthru
        _
      %p307 = scmp.le.s32.totalorder 1, %s20
      %p308 = scmp.lt.s32.totalorder %s20, 7
      %p309 = pnand %p307, %p308
      %p310 = pneg %p309
      // Predicated region
      $region45: #{tpu_custom_call.1} parent=5 // pred_check
        _
      $region46: #{tpu_custom_call.1} parent=5 // pred_check_branch
        %312 = sbr.rel (%p309) target = $region48
      $region47: #{tpu_custom_call.1} parent=5 // pred_region
        %s313 = ssub.s32 %s20, 1
        %s314 = sand.u32 %s25, 1
        %s315 = scalar_lea.sflag [#allocation4], %s314
        %s316 = sand.u32 %s45, 1
        %s317 = smul.addr %s316, 4
        %s318 = scalar_lea.vmem [#allocation3], %s317
        // Predicated region
        $region49: #{tpu_custom_call.1} parent=47 // pred_check
          %p319 = pneg %p58
        $region50: #{tpu_custom_call.1} parent=47 // pred_check_branch
          %321 = sbr.rel (%p319) target = $region52
        $region51: #{tpu_custom_call.1} parent=47 // pred_region
          %322 = dma.done %s315, 64
        $region52: #{tpu_custom_call.1} parent=47 // pred_fallthru
          _
        // Predicated region
        $region53: #{tpu_custom_call.1} parent=47 // pred_check
          %p323 = pneg %p79
        $region54: #{tpu_custom_call.1} parent=47 // pred_check_branch
          %325 = sbr.rel (%p323) target = $region56
        $region55: #{tpu_custom_call.1} parent=47 // pred_region
          %326 = dma.done [#allocation7], 256
        $region56: #{tpu_custom_call.1} parent=47 // pred_fallthru
          _
        %s327 = sand.u32 %s25, 1
        %s328 = scalar_lea.sflag [#allocation4], %s327
        %s329 = sand.u32 %s155, 1
        %s330 = smul.addr %s329, 16
        %s331 = scalar_lea.vmem [#allocation8], %s330
        // Predicated region
        $region57: #{tpu_custom_call.1} parent=47 // pred_check
          %p332 = pneg %p168
        $region58: #{tpu_custom_call.1} parent=47 // pred_check_branch
          %334 = sbr.rel (%p332) target = $region60
        $region59: #{tpu_custom_call.1} parent=47 // pred_region
          %335 = dma.done %s328, 256
        $region60: #{tpu_custom_call.1} parent=47 // pred_fallthru
          _
        %s336 = sand.u32 %s25, 1
        %s337 = scalar_lea.sflag [#allocation4], %s336
        %s338 = sand.u32 %s45, 1
        %s339 = smul.addr %s338, 4
        %s340 = scalar_lea.vmem [#allocation3], %s339
        %p341 = pneg %p58
        %p342 = pneg %p55
        %p343 = pneg %p79
        %p344 = pneg %p76
        %p345 = pneg %p100
        %p346 = pneg %p97
        %p347 = pneg %p121
        %p348 = pneg %p118
        %p349 = pneg %p142
        %p350 = pneg %p139
        %s351 = sand.u32 %s25, 1
        %s352 = scalar_lea.sflag [#allocation4], %s351
        %s353 = sand.u32 %s155, 1
        %s354 = smul.addr %s353, 16
        %s355 = scalar_lea.vmem [#allocation8], %s354
        %p356 = pneg %p168
        %p357 = pneg %p165
        %p358 = scmp.lt.s32.totalorder %s30, 2
        %s359 = scalar_select %p358, %s30, 2
        %s360 = scalar_lea.vmem %s6, %s359
        %p361 = pneg %p194
        %p362 = pneg %p191
        %p363 = pneg %p222
        %p364 = pneg %p219
        %s365 = sand.u32 %s209, 1
        %s366 = scalar_lea.sflag [#allocation5], %s365
        %s367 = sand.u32 %s209, 1
        %s368 = smul.addr %s367, 8
        %s369 = scalar_lea.vmem [#allocation9], %s368
        %p370 = scmp.lt.s32.totalorder %s30, 2
        %s371 = scalar_select %p370, %s30, 2
        %s372 = scalar_lea.vmem %s6, %s371
        %p374 = scmp.eq.s32.totalorder %s30, 0
        // Predicated region
        $region61: #{tpu_custom_call.1} parent=47 // pred_check
          %p375 = pneg %p374
        $region62: #{tpu_custom_call.1} parent=47 // pred_check_branch
          %377 = sbr.rel (%p375) target = $region64
        $region63: #{tpu_custom_call.1} parent=47 // pred_region
          %v378 = vld [vmem:[%s318] sm:$0xf]
          %v379 = vld [vmem:[#allocation6] sm:$0xf]
          %v380 = vld [vmem:[#allocation6 + $0x4] sm:$0xf]
          %v381 = vld [vmem:[#allocation6 + $0x8] sm:$0xf]
          %v382 = vld [vmem:[#allocation6 + $0xc] sm:$0xf]
          %v383 = vld [vmem:[%s2] sm:$0x1]
          %v385 = vlaneseq
          %v386 = vshrl.u32 %v385, 7
          %v387 = vsub.s32 0, %v386
          %v388 = vrot.slane %v383, %v387
          %v394 = vunpack.c.l.b16 %v379
          %v395 = vunpack.c.l.b16 %v380
          %v396 = vunpack.c.l.b16 %v381
          %v397 = vunpack.c.l.b16 %v382
          %v398 = vpack.c.b16 %v395, %v394
          %v399 = vpack.c.b16 %v397, %v396
          %vm402 = vcmask 261120
          %v404 = vsel %vm402, %v378, 0
          %406 = vmatprep.subr.bf16.mxu0 0
          %407 = vmatpush1.bf16.msra.mxu0 0
          %408 = vmatprep.subr.bf16.mxu0 0
          %409 = vmatpush1.bf16.msra.mxu0 0
          %410 = vmatprep.subr.bf16.mxu0 0
          %411 = vmatpush1.bf16.msra.mxu0 0
          %412 = vmatprep.subr.bf16.mxu0 0
          %413 = vmatpush1.bf16.msra.mxu0 0
          %414 = vmatprep.subr.bf16.mxu0 0
          %415 = vmatpush1.bf16.msra.mxu0 0
          %416 = vmatprep.subr.bf16.mxu0 0
          %417 = vmatpush1.bf16.msra.mxu0 0
          %418 = vmatprep.subr.bf16.mxu0 0
          %419 = vmatpush1.bf16.msra.mxu0 %v399
          %420 = vmatprep.subr.bf16.mxu0 0
          %421 = vmatpush1.bf16.msra.mxu0 %v398
          %422 = vmatprep.subr.bf16.mxu0 0
          %423 = vmatpush2.bf16.msra.mxu0 0
          %424 = vmatprep.subr.bf16.mxu0 0
          %425 = vmatpush2.bf16.msra.mxu0 0
          %426 = vmatprep.subr.bf16.mxu0 0
          %427 = vmatpush2.bf16.msra.mxu0 0
          %428 = vmatprep.subr.bf16.mxu0 0
          %429 = vmatpush2.bf16.msra.mxu0 0
          %430 = vmatprep.subr.bf16.mxu0 0
          %431 = vmatpush2.bf16.msra.mxu0 0
          %432 = vmatprep.subr.bf16.mxu0 0
          %433 = vmatpush2.bf16.msra.mxu0 0
          %434 = vmatprep.subr.bf16.mxu0 0
          %435 = vmatpush2.bf16.msra.mxu0 0
          %436 = vmatprep.subr.bf16.mxu0 0
          %437 = vmatpush2.bf16.msra.mxu0 0
          %438 = vmatprep.mubr.bf16.mxu0 0
          %439 = vmatmul.mubr.bf16.gmra.mxu0 %v404
          %v440 = vpop.f32.mrf.mxu0
          %v441 = vadd.f32 %v388, %v440
          %v442 = vpop.f32.mrf.mxu0
          %v443 = vpop.f32.mrf.mxu0
          %v444 = vpop.f32.mrf.mxu0
          %445 = vdwg.mxu0
          %v446 = vmul.f32 %v441, 0.5
          %v447 = vmul.f32 %v441, 0.70710677
          %v448 = verf.f32.pop %v447
          %v449 = vadd.f32 %v448, 1.0
          %v450 = vmul.f32 %v446, %v449
          %v451 = vsel %vm402, %v450, 0.0
          %452 = vadd.xlane.f32.xlu0 %v451
          %v453 = vpop.xlane.xlu0 %452
          %v454 = vrcp.pop 32.0
          %v455 = vmul.f32 %v453, %v454
          %v456 = vsub.f32 %v450, %v455
          %v457 = vmul.f32 %v456, %v456
          %v458 = vsel %vm402, %v457, 0.0
          %459 = vadd.xlane.f32.xlu0 %v458
          %v460 = vpop.xlane.xlu0 %459
          %v461 = vmul.f32 %v460, %v454
          %v462 = vadd.f32 %v461, 1e-12
          %v463 = vrsqrt.pop %v462
          %v464 = vmul.f32 %v456, %v463
          %v465 = vld [vmem:[%s3] sm:$0x1]
          %v467 = vlaneseq
          %v468 = vshrl.u32 %v467, 7
          %v469 = vsub.s32 0, %v468
          %v470 = vrot.slane %v465, %v469
          %v472 = vmul.f32 %v464, %v470
          %v473 = vld [vmem:[%s4] sm:$0x1]
          %v475 = vlaneseq
          %v476 = vshrl.u32 %v475, 7
          %v477 = vsub.s32 0, %v476
          %v478 = vrot.slane %v473, %v477
          %v480 = vadd.f32 %v472, %v478
          %v481 = vpack.c.bf16 %v480, %v480
          %vm482 = vcmask 257024
          %483 = vst.msk [vmem:[#allocation2] sm:$0xf] %vm482, %v481
        $region64: #{tpu_custom_call.1} parent=47 // pred_fallthru
          _
        %v484 = vld [vmem:[#allocation2] sm:$0xf]
        %v485 = vld [vmem:[%s331] sm:$0xf]
        %v486 = vld [vmem:[%s331 + $0x4] sm:$0xf]
        %v487 = vld [vmem:[%s331 + $0x8] sm:$0xf]
        %v488 = vld [vmem:[%s331 + $0xc] sm:$0xf]
        %v489 = vld [vmem:[%s372] sm:$0x1]
        %v491 = vlaneseq
        %v492 = vshrl.u32 %v491, 7
        %v493 = vsub.s32 0, %v492
        %v494 = vrot.slane %v489, %v493
        %v500 = vunpack.c.l.b16 %v485
        %v501 = vunpack.c.l.b16 %v486
        %v502 = vunpack.c.l.b16 %v487
        %v503 = vunpack.c.l.b16 %v488
        %v504 = vpack.c.b16 %v501, %v500
        %v505 = vpack.c.b16 %v503, %v502
        %vm508 = vcmask 261120
        %v510 = vsel %vm508, %v484, 0
        %512 = vmatprep.subr.bf16.mxu0 0
        %513 = vmatpush1.bf16.msra.mxu0 0
        %514 = vmatprep.subr.bf16.mxu0 0
        %515 = vmatpush1.bf16.msra.mxu0 0
        %516 = vmatprep.subr.bf16.mxu0 0
        %517 = vmatpush1.bf16.msra.mxu0 0
        %518 = vmatprep.subr.bf16.mxu0 0
        %519 = vmatpush1.bf16.msra.mxu0 0
        %520 = vmatprep.subr.bf16.mxu0 0
        %521 = vmatpush1.bf16.msra.mxu0 0
        %522 = vmatprep.subr.bf16.mxu0 0
        %523 = vmatpush1.bf16.msra.mxu0 0
        %524 = vmatprep.subr.bf16.mxu0 0
        %525 = vmatpush1.bf16.msra.mxu0 %v505
        %526 = vmatprep.subr.bf16.mxu0 0
        %527 = vmatpush1.bf16.msra.mxu0 %v504
        %528 = vmatprep.subr.bf16.mxu0 0
        %529 = vmatpush2.bf16.msra.mxu0 0
        %530 = vmatprep.subr.bf16.mxu0 0
        %531 = vmatpush2.bf16.msra.mxu0 0
        %532 = vmatprep.subr.bf16.mxu0 0
        %533 = vmatpush2.bf16.msra.mxu0 0
        %534 = vmatprep.subr.bf16.mxu0 0
        %535 = vmatpush2.bf16.msra.mxu0 0
        %536 = vmatprep.subr.bf16.mxu0 0
        %537 = vmatpush2.bf16.msra.mxu0 0
        %538 = vmatprep.subr.bf16.mxu0 0
        %539 = vmatpush2.bf16.msra.mxu0 0
        %540 = vmatprep.subr.bf16.mxu0 0
        %541 = vmatpush2.bf16.msra.mxu0 0
        %542 = vmatprep.subr.bf16.mxu0 0
        %543 = vmatpush2.bf16.msra.mxu0 0
        %544 = vmatprep.mubr.bf16.mxu0 0
        %545 = vmatmul.mubr.bf16.gmra.mxu0 %v510
        %v546 = vpop.f32.mrf.mxu0
        %v547 = vadd.f32 %v494, %v546
        %v548 = vpop.f32.mrf.mxu0
        %v549 = vpop.f32.mrf.mxu0
        %v550 = vpop.f32.mrf.mxu0
        %551 = vdwg.mxu0
        %552 = vst [vmem:[%s369] sm:$0xff] %v547
        %s553 = sand.u32 %s209, 1
        %s554 = scalar_lea.sflag [#allocation5], %s553
        %s555 = sand.u32 %s209, 1
        %s556 = smul.addr %s555, 8
        %s557 = scalar_lea.vmem [#allocation9], %s556
        // Predicated region
        $region65: #{tpu_custom_call.1} parent=47 // pred_check
          %p558 = pneg %p219
        $region66: #{tpu_custom_call.1} parent=47 // pred_check_branch
          %560 = sbr.rel (%p558) target = $region68
        $region67: #{tpu_custom_call.1} parent=47 // pred_region
          %s562 = ssub.s32 128, 128
          %563 = vsyncadd %s554, %s562
          %s564 = smul.addr %s29, 3
          %s565 = sadd.s32 %s30, %s564
          %s566 = smul.addr %s565, 128
          %s567 = scalar_lea.hbm %s7, %s566
          %s569 = sshll.u32 %s557, 4
          %s570 = int_to_ptr.vmem [resolvable:$true] %s569
          %572 = dma.vmem_to_hbm [thread:$0]  %s570, 128, %s567, %s554
        $region68: #{tpu_custom_call.1} parent=47 // pred_fallthru
          _
      $region48: #{tpu_custom_call.1} parent=5 // pred_fallthru
        _
      %p573 = scmp.le.s32.totalorder 2, %s20
      // Predicated region
      $region69: #{tpu_custom_call.1} parent=5 // pred_check
        %p574 = pneg %p573
      $region70: #{tpu_custom_call.1} parent=5 // pred_check_branch
        %576 = sbr.rel (%p574) target = $region72
      $region71: #{tpu_custom_call.1} parent=5 // pred_region
        %s577 = ssub.s32 %s20, 2
        // Predicated region
        $region73: #{tpu_custom_call.1} parent=71 // pred_check
          %p578 = pneg %p225
        $region74: #{tpu_custom_call.1} parent=71 // pred_check_branch
          %580 = sbr.rel (%p578) target = $region76
        $region75: #{tpu_custom_call.1} parent=71 // pred_region
          %s581 = sand.u32 %s210, 1
          %s582 = scalar_lea.sflag [#allocation5], %s581
          %s583 = sand.u32 %s210, 1
          %s584 = smul.addr %s583, 8
          %s585 = scalar_lea.vmem [#allocation9], %s584
          %586 = dma.done %s582, 128
        $region76: #{tpu_custom_call.1} parent=71 // pred_fallthru
          _
      $region72: #{tpu_custom_call.1} parent=5 // pred_fallthru
        _
    $region6: #{tpu_custom_call.1} parent=1 // loop_footer
      %s24 = sadd.s32 1, %s20
    $region7: #{tpu_custom_call.1} parent=1 // loop_footer_branch
      %19 = sbr.rel target = $region3
    $region8: #{tpu_custom_call.1} parent=1 // loop_exit
      _
    %587 = vsyncpa [#allocation4], 1
    %s588 = scalar_lea.sflag [#allocation4], 1
    %589 = vsyncpa %s588, 1
    %590 = vsyncpa [#allocation7], 1
    %591 = vsyncpa [#allocation5], 1
    %s592 = scalar_lea.sflag [#allocation5], 1
    %593 = vsyncpa %s592, 1

</llo_original>
